<compile_context>
chip_gen: v7x
topology: tpu7x:2x2x1
jax: 0.10.0
libtpu: 0.0.40
codegen_flags: <defaults>
</compile_context>

<pallas_src>
import jax
import jax.numpy as jnp
from jax.experimental import pallas as pl
from jax.experimental.pallas import tpu as pltpu


def _round_up(x: int, m: int) -> int:
    return (x + m - 1) // m * m


# --------------------------------------------------------------------------
# Kernel: grid = (M tiles, N tiles, K tiles); K (reduction) is the last axis.
# The output block is resident across k (index_map ignores k), so we
# accumulate into o_ref directly — no scratch accumulator needed for f32 out.
# --------------------------------------------------------------------------
def _weight_fact_linear_kernel(x_ref, v_ref, g_ref, b_ref, o_ref):
    k = pl.program_id(2)

    @pl.when(k == 0)
    def _init():
        o_ref[...] = jnp.zeros_like(o_ref)

    # bf16 (tm,tk) @ bf16 (tk,tn) with f32 accumulation on the MXU.
    o_ref[...] += jnp.dot(x_ref[...], v_ref[...],
                          preferred_element_type=jnp.float32)

    @pl.when(k == pl.num_programs(2) - 1)
    def _epilogue():
        # g: per-output-feature scale as a lane-dense (1, tn) f32 row
        # (folding g after the K-sum is exact); bias likewise.
        o_ref[...] = o_ref[...] * g_ref[...] + b_ref[...]


# --------------------------------------------------------------------------
# One-time parameter preparation (NOT on the per-call hot path).
# --------------------------------------------------------------------------
def prepare_weight_fact_params(g, v, bias=None, *, tn=256, tk=1024):
    """Cast, pre-transpose and pad the static parameters once.

    g: (N, 1) f32, v: (N, K) f32, bias: (N,) f32 or None.
    """
    N, K = v.shape
    tn_ = min(tn, _round_up(N, 128))   # lane-aligned -> unmasked vst
    tk_ = min(tk, _round_up(K, 128))   # lane-aligned loads
    Np = _round_up(N, tn_)
    Kp = _round_up(K, tk_)

    # Pre-transpose + bf16 cast + pad the weight once (weights are static).
    vT = jnp.pad(v.astype(jnp.bfloat16).T, ((0, Kp - K), (0, Np - N)))
    g_row = jnp.pad(jnp.reshape(g, (1, N)).astype(jnp.float32),
                    ((0, 0), (0, Np - N)))
    if bias is None:
        b_row = jnp.zeros((1, Np), dtype=jnp.float32)
    else:
        b_row = jnp.pad(jnp.reshape(bias, (1, N)).astype(jnp.float32),
                        ((0, 0), (0, Np - N)))
    # TODO(synk): optional v7x fp8 weight path (per-row quant folded into g).
    return dict(vT=vT, g_row=g_row, b_row=b_row, N=N, K=K, tn=tn_, tk=tk_)


def _pick_tm(M: int, tm_max: int = 256, align: int = 16,
             max_waste: float = 0.10) -> int:
    """Sublane-aligned (bf16: 16) tm keeping M-padding waste small."""
    Ma = _round_up(M, align)
    if Ma <= tm_max:
        return Ma
    best, best_pad = align, _round_up(M, align) - M
    cand = tm_max
    while cand >= align:
        pad = _round_up(M, cand) - M
        if pad <= max_waste * M:
            return cand                     # largest tile with small waste
        if pad < best_pad:
            best, best_pad = cand, pad
        cand -= align
    return best


# --------------------------------------------------------------------------
# Per-call forward pass: only x is padded / cast here.
# --------------------------------------------------------------------------
def weight_fact_linear(x, params, *, tm_max=256):
    """out = x @ (g*v).T + bias  using parameters from prepare_weight_fact_params."""
    M, K = x.shape
    assert K == params["K"], "in_features mismatch between x and v"
    N = params["N"]
    tn_, tk_ = params["tn"], params["tk"]
    vT, g_row, b_row = params["vT"], params["g_row"], params["b_row"]
    Kp, Np = vT.shape

    tm_ = _pick_tm(M, tm_max=tm_max, align=16)   # 16: bf16 sublane packing
    Mp = _round_up(M, tm_)

    # v7x has 2 TensorCores; avoid a single parallel (i,j) tile when the
    # problem is large enough to split without extra padding.
    if (Mp // tm_) * (Np // tn_) == 1 and tm_ % 32 == 0 and M > 128:
        tm_ //= 2

    x_p = jnp.pad(x.astype(jnp.bfloat16), ((0, Mp - M), (0, Kp - K)))

    grid = (Mp // tm_, Np // tn_, Kp // tk_)

    # VMEM: double-buffered bf16 x / v tiles + resident f32 output tile + rows.
    vmem_est = (2 * (tm_ * tk_ + tk_ * tn_) * 2   # x, v tiles (bf16, double-buffered)
                + 2 * tm_ * tn_ * 4               # f32 output tile (double-buffered)
                + 2 * 2 * tn_ * 4)                # g / bias rows
    try:
        vmem_cap = int(pltpu.get_tpu_info().vmem_capacity_bytes)
    except Exception:
        vmem_cap = 64 * 1024 * 1024               # conservative (v7x per-TC)
    vmem_limit = int(min(max(2 * vmem_est, 32 * 1024 * 1024),
                         (3 * vmem_cap) // 4))

    out_p = pl.pallas_call(
        _weight_fact_linear_kernel,
        out_shape=jax.ShapeDtypeStruct((Mp, Np), jnp.float32),
        grid_spec=pltpu.PrefetchScalarGridSpec(
            num_scalar_prefetch=0,
            grid=grid,
            in_specs=[
                pl.BlockSpec((tm_, tk_), lambda i, j, k: (i, k)),  # x  (bf16)
                pl.BlockSpec((tk_, tn_), lambda i, j, k: (k, j)),  # v.T (bf16)
                pl.BlockSpec((1, tn_), lambda i, j, k: (0, j)),    # g row (f32)
                pl.BlockSpec((1, tn_), lambda i, j, k: (0, j)),    # bias row (f32)
            ],
            out_specs=pl.BlockSpec((tm_, tn_), lambda i, j, k: (i, j)),
        ),
        compiler_params=pltpu.CompilerParams(
            dimension_semantics=("parallel", "parallel", "arbitrary"),
            vmem_limit_bytes=vmem_limit,
        ),
    )(x_p, vT, g_row, b_row)

    return out_p[:M, :N].astype(x.dtype)


def weight_fact_linear_forward(x, g, v, bias=None):
    """Convenience one-shot API (prep + call). Prefer caching the params."""
    return weight_fact_linear(x, prepare_weight_fact_params(g, v, bias))


def init_weight_fact_params(key, in_features, out_features, mean=1.0, stddev=0.1):
    """Deterministic re-implementation of WeightFactLinear.reset_parameters."""
    k_w, k_g = jax.random.split(key)
    limit = jnp.sqrt(6.0 / (in_features + out_features))     # xavier_uniform_
    w = jax.random.uniform(k_w, (out_features, in_features),
                           minval=-limit, maxval=limit, dtype=jnp.float32)
    g = jnp.exp(mean + stddev * jax.random.normal(
        k_g, (out_features, 1), dtype=jnp.float32))
    v = w / g
    bias = jnp.zeros((out_features,), dtype=jnp.float32)
    return g, v, bias


if __name__ == "__main__":
    key = jax.random.PRNGKey(0)
    k_param, k_x = jax.random.split(key)

    batch, in_features, out_features = 8, 32, 64
    g, v, bias = init_weight_fact_params(k_param, in_features, out_features)
    x = jax.random.normal(k_x, (batch, in_features), dtype=jnp.float32)

    # Prepare the static parameters once, then run the per-call kernel.
    params = prepare_weight_fact_params(g, v, bias)
    out = weight_fact_linear(x, params)
    out = jax.block_until_ready(out)

    # Pure-JAX f32 reference of the forward semantics: F.linear(x, g * v, bias).
    ref = x @ (g * v).T + bias[None, :]
    assert out.shape == (batch, out_features)
    # bf16 MXU feed -> loosened tolerance vs. the f32 reference.
    assert jnp.allclose(out, ref, atol=2e-2, rtol=2e-2), (
        float(jnp.max(jnp.abs(out - ref)))
    )

    print("KERNEL_OK")
</pallas_src>

<mosaic_0001>
module attributes {stable_mosaic.version = 11 : i64} {
  func.func @_weight_fact_linear_kernel(%arg0: i32, %arg1: i32, %arg2: i32, %arg3: memref<16x128xbf16, #tpu.memory_space<vmem>>, %arg4: memref<128x128xbf16, #tpu.memory_space<vmem>>, %arg5: memref<1x128xf32, #tpu.memory_space<vmem>>, %arg6: memref<1x128xf32, #tpu.memory_space<vmem>>, %arg7: memref<16x128xf32, #tpu.memory_space<vmem>>) attributes {dimension_semantics = [#tpu.dimension_semantics<parallel>, #tpu.dimension_semantics<parallel>, #tpu.dimension_semantics<arbitrary>], iteration_bounds = array<i64: 1, 1, 1>, scalar_prefetch = 0 : i64, scratch_operands = 0 : i64, tpu.core_type = #tpu.core_type<tc>, window_params = [{transform_indices = @transform_0, window_bounds = array<i64: 16, 128>}, {transform_indices = @transform_1, window_bounds = array<i64: 128, 128>}, {transform_indices = @transform_2, window_bounds = array<i64: 1, 128>}, {transform_indices = @transform_3, window_bounds = array<i64: 1, 128>}, {transform_indices = @transform_4, window_bounds = array<i64: 16, 128>}]} {
    %c0_i32 = arith.constant 0 : i32
    %0 = arith.cmpi eq, %arg2, %c0_i32 : i32
    %1 = arith.extui %0 : i1 to i32
    %c0_i32_0 = arith.constant 0 : i32
    %2 = arith.cmpi ne, %1, %c0_i32_0 : i32
    scf.if %2 {
      %cst_10 = arith.constant 0.000000e+00 : f32
      %12 = vector.broadcast %cst_10 : f32 to vector<16x128xf32>
      %c0_11 = arith.constant 0 : index
      %c0_12 = arith.constant 0 : index
      %13 = vector.load %arg7[%c0_11, %c0_12] : memref<16x128xf32, #tpu.memory_space<vmem>>, vector<16x128xf32>
      tpu.vector_store %arg7[%c0_11, %c0_12], %12 {strides = array<i32>} : memref<16x128xf32, #tpu.memory_space<vmem>>, vector<16x128xf32>,
    } else {
    }
    %c0 = arith.constant 0 : index
    %c0_1 = arith.constant 0 : index
    %3 = vector.load %arg7[%c0, %c0_1] : memref<16x128xf32, #tpu.memory_space<vmem>>, vector<16x128xf32>
    %c0_2 = arith.constant 0 : index
    %c0_3 = arith.constant 0 : index
    %4 = vector.load %arg3[%c0_2, %c0_3] : memref<16x128xbf16, #tpu.memory_space<vmem>>, vector<16x128xbf16>
    %c0_4 = arith.constant 0 : index
    %c0_5 = arith.constant 0 : index
    %5 = vector.load %arg4[%c0_4, %c0_5] : memref<128x128xbf16, #tpu.memory_space<vmem>>, vector<128x128xbf16>
    %cst = arith.constant dense<0.000000e+00> : vector<16x128xf32>
    %6 = tpu.matmul %4, %5, %cst {dimension_numbers = #tpu.dot_dimension_numbers<[1], [0], [0], [1], [0, 0, 1, 1], [], []>} : vector<16x128xbf16>, vector<128x128xbf16>, vector<16x128xf32> -> vector<16x128xf32>
    %7 = arith.addf %3, %6 : vector<16x128xf32>
    %c0_6 = arith.constant 0 : index
    %c0_7 = arith.constant 0 : index
    %8 = vector.load %arg7[%c0_6, %c0_7] : memref<16x128xf32, #tpu.memory_space<vmem>>, vector<16x128xf32>
    tpu.vector_store %arg7[%c0_6, %c0_7], %7 {strides = array<i32>} : memref<16x128xf32, #tpu.memory_space<vmem>>, vector<16x128xf32>,
    %c0_i32_8 = arith.constant 0 : i32
    %9 = arith.cmpi eq, %arg2, %c0_i32_8 : i32
    %10 = arith.extui %9 : i1 to i32
    %c0_i32_9 = arith.constant 0 : i32
    %11 = arith.cmpi ne, %10, %c0_i32_9 : i32
    scf.if %11 {
      %c0_10 = arith.constant 0 : index
      %c0_11 = arith.constant 0 : index
      %12 = vector.load %arg7[%c0_10, %c0_11] : memref<16x128xf32, #tpu.memory_space<vmem>>, vector<16x128xf32>
      %c0_12 = arith.constant 0 : index
      %c0_13 = arith.constant 0 : index
      %13 = vector.load %arg5[%c0_12, %c0_13] : memref<1x128xf32, #tpu.memory_space<vmem>>, vector<1x128xf32>
      %14 = vector.broadcast %13 : vector<1x128xf32> to vector<16x128xf32>
      %15 = arith.mulf %12, %14 : vector<16x128xf32>
      %c0_14 = arith.constant 0 : index
      %c0_15 = arith.constant 0 : index
      %16 = vector.load %arg6[%c0_14, %c0_15] : memref<1x128xf32, #tpu.memory_space<vmem>>, vector<1x128xf32>
      %17 = vector.broadcast %16 : vector<1x128xf32> to vector<16x128xf32>
      %18 = arith.addf %15, %17 : vector<16x128xf32>
      %c0_16 = arith.constant 0 : index
      %c0_17 = arith.constant 0 : index
      %19 = vector.load %arg7[%c0_16, %c0_17] : memref<16x128xf32, #tpu.memory_space<vmem>>, vector<16x128xf32>
      tpu.vector_store %arg7[%c0_16, %c0_17], %18 {strides = array<i32>} : memref<16x128xf32, #tpu.memory_space<vmem>>, vector<16x128xf32>,
    } else {
    }
    return
  }
  func.func @transform_0(%arg0: i32, %arg1: i32, %arg2: i32) -> (i32, i32) {
    %c0_i32 = arith.constant 0 : i32
    return %arg0, %arg2 : i32, i32
  }
  func.func @transform_1(%arg0: i32, %arg1: i32, %arg2: i32) -> (i32, i32) {
    %c0_i32 = arith.constant 0 : i32
    return %arg2, %arg1 : i32, i32
  }
  func.func @transform_2(%arg0: i32, %arg1: i32, %arg2: i32) -> (i32, i32) {
    %c0_i32 = arith.constant 0 : i32
    %c0_i32_0 = arith.constant 0 : i32
    return %c0_i32, %arg1 : i32, i32
  }
  func.func @transform_3(%arg0: i32, %arg1: i32, %arg2: i32) -> (i32, i32) {
    %c0_i32 = arith.constant 0 : i32
    %c0_i32_0 = arith.constant 0 : i32
    return %c0_i32, %arg1 : i32, i32
  }
  func.func @transform_4(%arg0: i32, %arg1: i32, %arg2: i32) -> (i32, i32) {
    %c0_i32 = arith.constant 0 : i32
    return %arg0, %arg1 : i32, i32
  }
}

</mosaic_0001>

<llo_original>
// kernel: tpu_custom_call.1
$region0: #{tpu_custom_call.1}
  #allocation0 [shape = 'u32[]', space=smem, size = 0x4, offset = 0x4, fixed_abs, tag = 'smem constant byte address 0x4 - core index']
  #allocation1 [shape = 'u32[144,128]{1,0:T(1,128)}', space=vmem, size = 0x12000, scoped, tag = 'internal scratch']
  %s0 = inlined_call_operand.hbm [shape: bf16[16,128], index: 0, kind: input, shape index: {}]
  %s1 = inlined_call_operand.hbm [shape: bf16[128,128], index: 1, kind: input, shape index: {}]
  %s2 = inlined_call_operand.vmem [shape: f32[1,128], index: 2, kind: input, shape index: {}]
  %s3 = inlined_call_operand.vmem [shape: f32[1,128], index: 3, kind: input, shape index: {}]
  %s4 = inlined_call_operand.hbm [shape: f32[16,128], index: 4, kind: output, shape index: {}]
  %s5 = sld [smem:[#allocation0]]
  $region42: #{tpu_custom_call.1} parent=0
    _
  %s7 = ssub.s32 1, %s5
  %s8 = scalar_select 0, %s7, %s5
  $region1: #{tpu_custom_call.1} parent=0
    #allocation2 [shape = 'u8[4096]{0}', space=vmem, size = 0x1000, scoped, tag = 'input window, operand 0, single buffered']
    #allocation3 [shape = 's32[1]{0}', space=sflag, size = 0x4, scoped, tag = 'scoped memory for tpu_custom_call.1']
    #allocation4 [shape = 's32[1]{0}', space=sflag, size = 0x4, scoped, tag = 'scoped memory for tpu_custom_call.1']
    #allocation5 [shape = 'u8[32768]{0}', space=vmem, size = 0x8000, scoped, tag = 'input window, operand 1, single buffered']
    #allocation6 [shape = 's32[1]{0}', space=sflag, size = 0x4, scoped, tag = 'scoped memory for tpu_custom_call.1']
    #allocation7 [shape = 'u8[8192]{0}', space=vmem, size = 0x2000, scoped, tag = 'output window, operand 0, single buffered']
    %9 = vsyncpa [#allocation3], 0
    %10 = vsyncpa [#allocation6], 0
    %11 = vsyncpa [#allocation4], 0
    // Predicated region
    $region2: #{tpu_custom_call.1} parent=1 // pred_check
      _
    $region3: #{tpu_custom_call.1} parent=1 // pred_check_branch
      %13 = sbr.rel (0) target = $region5
    $region4: #{tpu_custom_call.1} parent=1 // pred_region
      %s15 = ssub.s32 128, 128
      %16 = vsyncadd [#allocation3], %s15
      %s17 = sshll.u32 [#allocation2], 4
      %s18 = int_to_ptr.vmem [resolvable:$true] %s17
      %23 = dma.hbm_to_vmem [thread:$0]  %s0, 128, %s18, [#allocation3], 64, 64, 4
    $region5: #{tpu_custom_call.1} parent=1 // pred_fallthru
      _
    // Predicated region
    $region6: #{tpu_custom_call.1} parent=1 // pred_check
      _
    $region7: #{tpu_custom_call.1} parent=1 // pred_check_branch
      %25 = sbr.rel (0) target = $region9
    $region8: #{tpu_custom_call.1} parent=1 // pred_region
      %s27 = ssub.s32 1024, 1024
      %28 = vsyncadd [#allocation6], %s27
      %s29 = sshll.u32 [#allocation5], 4
      %s30 = int_to_ptr.vmem [resolvable:$true] %s29
      %35 = dma.hbm_to_vmem [thread:$0]  %s1, 1024, %s30, [#allocation6], 64, 64, 4
    $region9: #{tpu_custom_call.1} parent=1 // pred_fallthru
      _
    // Predicated region
    $region10: #{tpu_custom_call.1} parent=1 // pred_check
      _
    $region11: #{tpu_custom_call.1} parent=1 // pred_check_branch
      %37 = sbr.rel (0) target = $region13
    $region12: #{tpu_custom_call.1} parent=1 // pred_region
      _
    $region13: #{tpu_custom_call.1} parent=1 // pred_fallthru
      _
    // Predicated region
    $region14: #{tpu_custom_call.1} parent=1 // pred_check
      _
    $region15: #{tpu_custom_call.1} parent=1 // pred_check_branch
      %39 = sbr.rel (0) target = $region17
    $region16: #{tpu_custom_call.1} parent=1 // pred_region
      _
    $region17: #{tpu_custom_call.1} parent=1 // pred_fallthru
      _
    // Predicated region
    $region18: #{tpu_custom_call.1} parent=1 // pred_check
      _
    $region19: #{tpu_custom_call.1} parent=1 // pred_check_branch
      %41 = sbr.rel (0) target = $region21
    $region20: #{tpu_custom_call.1} parent=1 // pred_region
      %42 = dma.done [#allocation3], 128
    $region21: #{tpu_custom_call.1} parent=1 // pred_fallthru
      _
    // Predicated region
    $region22: #{tpu_custom_call.1} parent=1 // pred_check
      _
    $region23: #{tpu_custom_call.1} parent=1 // pred_check_branch
      %44 = sbr.rel (0) target = $region25
    $region24: #{tpu_custom_call.1} parent=1 // pred_region
      %45 = dma.done [#allocation6], 1024
    $region25: #{tpu_custom_call.1} parent=1 // pred_fallthru
      _
    %p47 = scmp.eq.s32.totalorder 0, 0
    // Predicated region
    $region26: #{tpu_custom_call.1} parent=1 // pred_check
      %p48 = pneg %p47
    $region27: #{tpu_custom_call.1} parent=1 // pred_check_branch
      %50 = sbr.rel (%p48) target = $region29
    $region28: #{tpu_custom_call.1} parent=1 // pred_region
      %51 = vst [vmem:[#allocation7] sm:$0xff] 0.0
      %52 = vst [vmem:[#allocation7 + $0x8] sm:$0xff] 0.0
    $region29: #{tpu_custom_call.1} parent=1 // pred_fallthru
      _
    %v53 = vld [vmem:[#allocation7] sm:$0xff]
    %v54 = vld [vmem:[#allocation7 + $0x8] sm:$0xff]
    %v55 = vld [vmem:[#allocation2] sm:$0xf]
    %v56 = vld [vmem:[#allocation2 + $0x4] sm:$0xf]
    %v57 = vld [vmem:[#allocation5] sm:$0xf]
    %v58 = vld [vmem:[#allocation5 + $0x4] sm:$0xf]
    %v59 = vld [vmem:[#allocation5 + $0x8] sm:$0xf]
    %v60 = vld [vmem:[#allocation5 + $0xc] sm:$0xf]
    %v61 = vld [vmem:[#allocation5 + $0x10] sm:$0xf]
    %v62 = vld [vmem:[#allocation5 + $0x14] sm:$0xf]
    %v63 = vld [vmem:[#allocation5 + $0x18] sm:$0xf]
    %v64 = vld [vmem:[#allocation5 + $0x1c] sm:$0xf]
    %v65 = vld [vmem:[#allocation5 + $0x20] sm:$0xf]
    %v66 = vld [vmem:[#allocation5 + $0x24] sm:$0xf]
    %v67 = vld [vmem:[#allocation5 + $0x28] sm:$0xf]
    %v68 = vld [vmem:[#allocation5 + $0x2c] sm:$0xf]
    %v69 = vld [vmem:[#allocation5 + $0x30] sm:$0xf]
    %v70 = vld [vmem:[#allocation5 + $0x34] sm:$0xf]
    %v71 = vld [vmem:[#allocation5 + $0x38] sm:$0xf]
    %v72 = vld [vmem:[#allocation5 + $0x3c] sm:$0xf]
    %v75 = vunpack.c.l.b16 %v55
    %v76 = vunpack.c.l.b16 %v56
    %v77 = vpack.c.b16 %v76, %v75
    %v95 = vunpack.c.l.b16 %v57
    %v96 = vunpack.c.l.b16 %v58
    %v97 = vunpack.c.l.b16 %v59
    %v98 = vunpack.c.l.b16 %v60
    %v99 = vunpack.c.l.b16 %v61
    %v100 = vunpack.c.l.b16 %v62
    %v101 = vunpack.c.l.b16 %v63
    %v102 = vunpack.c.l.b16 %v64
    %v103 = vunpack.c.l.b16 %v65
    %v104 = vunpack.c.l.b16 %v66
    %v105 = vunpack.c.l.b16 %v67
    %v106 = vunpack.c.l.b16 %v68
    %v107 = vunpack.c.l.b16 %v69
    %v108 = vunpack.c.l.b16 %v70
    %v109 = vunpack.c.l.b16 %v71
    %v110 = vunpack.c.l.b16 %v72
    %v111 = vpack.c.b16 %v96, %v95
    %v112 = vpack.c.b16 %v98, %v97
    %v113 = vpack.c.b16 %v100, %v99
    %v114 = vpack.c.b16 %v102, %v101
    %v115 = vpack.c.b16 %v104, %v103
    %v116 = vpack.c.b16 %v106, %v105
    %v117 = vpack.c.b16 %v108, %v107
    %v118 = vpack.c.b16 %v110, %v109
    %127 = vmatprep.subr.bf16.mxu0 0
    %128 = vmatpush1.bf16.msra.mxu0 %v111
    %129 = vmatprep.subr.bf16.mxu0 0
    %130 = vmatpush1.bf16.msra.mxu0 %v112
    %131 = vmatprep.subr.bf16.mxu0 0
    %132 = vmatpush1.bf16.msra.mxu0 %v113
    %133 = vmatprep.subr.bf16.mxu0 0
    %134 = vmatpush1.bf16.msra.mxu0 %v114
    %135 = vmatprep.subr.bf16.mxu0 0
    %136 = vmatpush1.bf16.msra.mxu0 %v115
    %137 = vmatprep.subr.bf16.mxu0 0
    %138 = vmatpush1.bf16.msra.mxu0 %v116
    %139 = vmatprep.subr.bf16.mxu0 0
    %140 = vmatpush1.bf16.msra.mxu0 %v117
    %141 = vmatprep.subr.bf16.mxu0 0
    %142 = vmatpush1.bf16.msra.mxu0 %v118
    %143 = vmatprep.subr.bf16.mxu0 0
    %144 = vmatpush1.bf16.msra.mxu0 0
    %145 = vmatprep.subr.bf16.mxu0 0
    %146 = vmatpush1.bf16.msra.mxu0 0
    %147 = vmatprep.subr.bf16.mxu0 0
    %148 = vmatpush1.bf16.msra.mxu0 0
    %149 = vmatprep.subr.bf16.mxu0 0
    %150 = vmatpush1.bf16.msra.mxu0 0
    %151 = vmatprep.subr.bf16.mxu0 0
    %152 = vmatpush1.bf16.msra.mxu0 0
    %153 = vmatprep.subr.bf16.mxu0 0
    %154 = vmatpush1.bf16.msra.mxu0 0
    %155 = vmatprep.subr.bf16.mxu0 0
    %156 = vmatpush1.bf16.msra.mxu0 0
    %157 = vmatprep.subr.bf16.mxu0 0
    %158 = vmatpush1.bf16.msra.mxu0 0
    %159 = vmatprep.mubr.bf16.mxu0 0
    %160 = vmatmul.mubr.bf16.gmra.mrb[0].mxu0 %v77
    %v161 = vpop.f32.mrb[0].mxu0
    %v162 = vadd.f32 0.0, %v161
    %v163 = vpop.f32.mrb[0].mxu0
    %v164 = vpop.f32.mrb[0].mxu0
    %v165 = vadd.f32 0.0, %v164
    %v166 = vpop.f32.mrb[0].mxu0
    %167 = vdwg.mxu0
    %v168 = vadd.f32 %v53, %v162
    %v169 = vadd.f32 %v54, %v165
    %170 = vst [vmem:[#allocation7] sm:$0xff] %v168
    %171 = vst [vmem:[#allocation7 + $0x8] sm:$0xff] %v169
    // Predicated region
    $region30: #{tpu_custom_call.1} parent=1 // pred_check
      %p172 = pneg %p47
    $region31: #{tpu_custom_call.1} parent=1 // pred_check_branch
      %174 = sbr.rel (%p172) target = $region33
    $region32: #{tpu_custom_call.1} parent=1 // pred_region
      %v175 = vld [vmem:[#allocation7] sm:$0xff]
      %v176 = vld [vmem:[#allocation7 + $0x8] sm:$0xff]
      %v177 = vld [vmem:[%s2] sm:$0x1]
      %v179 = vlaneseq
      %v180 = vshrl.u32 %v179, 7
      %v181 = vsub.s32 0, %v180
      %v182 = vrot.slane %v177, %v181
      %v184 = vmul.f32 %v175, %v182
      %v185 = vmul.f32 %v176, %v182
      %v186 = vld [vmem:[%s3] sm:$0x1]
      %v188 = vlaneseq
      %v189 = vshrl.u32 %v188, 7
      %v190 = vsub.s32 0, %v189
      %v191 = vrot.slane %v186, %v190
      %v193 = vadd.f32 %v184, %v191
      %v194 = vadd.f32 %v185, %v191
      %195 = vst [vmem:[#allocation7] sm:$0xff] %v193
      %196 = vst [vmem:[#allocation7 + $0x8] sm:$0xff] %v194
    $region33: #{tpu_custom_call.1} parent=1 // pred_fallthru
      _
    // Predicated region
    $region34: #{tpu_custom_call.1} parent=1 // pred_check
      _
    $region35: #{tpu_custom_call.1} parent=1 // pred_check_branch
      %198 = sbr.rel (0) target = $region37
    $region36: #{tpu_custom_call.1} parent=1 // pred_region
      %s200 = ssub.s32 256, 256
      %201 = vsyncadd [#allocation4], %s200
      %s202 = sshll.u32 [#allocation7], 4
      %s203 = int_to_ptr.vmem [resolvable:$true] %s202
      %208 = dma.vmem_to_hbm [thread:$0]  %s203, 256, %s4, [#allocation4], 128, 128, 8
    $region37: #{tpu_custom_call.1} parent=1 // pred_fallthru
      _
    // Predicated region
    $region38: #{tpu_custom_call.1} parent=1 // pred_check
      _
    $region39: #{tpu_custom_call.1} parent=1 // pred_check_branch
      %210 = sbr.rel (0) target = $region41
    $region40: #{tpu_custom_call.1} parent=1 // pred_region
      %211 = dma.done [#allocation4], 256
    $region41: #{tpu_custom_call.1} parent=1 // pred_fallthru
      _
    %212 = vsyncpa [#allocation3], 1
    %213 = vsyncpa [#allocation6], 1
    %214 = vsyncpa [#allocation4], 1

</llo_original>
